<compile_context>
chip_gen: v6e
topology: v6e:2x2x1
jax: 0.10.0
libtpu: 0.0.40
codegen_flags: <defaults>
</compile_context>

<pallas_src>
import jax
import jax.numpy as jnp
from jax.experimental import pallas as pl
from jax.experimental.pallas import tpu as pltpu

FOLD = 8  # batch rows folded into the lane dimension


def _mlp_kernel(x_ref,
                w1_ref, b1_ref,
                w2_ref, b2_ref,
                w3_ref, b3_ref,
                wh_ref, bh_ref,
                y_ref):
    # x arrives f32 from HBM; cast to bf16 on the VPU inside the pipeline.
    # All matmuls accumulate in f32 on the MXU; bias/ReLU/sigmoid stay f32.
    x = x_ref[...].astype(jnp.bfloat16)

    h1 = jnp.dot(x, w1_ref[...], preferred_element_type=jnp.float32) + b1_ref[...]
    h1 = jnp.maximum(h1, 0.0)

    h2 = jnp.dot(h1.astype(jnp.bfloat16), w2_ref[...],
                 preferred_element_type=jnp.float32) + b2_ref[...]
    h2 = jnp.maximum(h2, 0.0)

    h3 = jnp.dot(h2.astype(jnp.bfloat16), w3_ref[...],
                 preferred_element_type=jnp.float32) + b3_ref[...]
    h3 = jnp.maximum(h3, 0.0)

    z = jnp.dot(h3.astype(jnp.bfloat16), wh_ref[...],
                preferred_element_type=jnp.float32) + bh_ref[...]
    # Exact sigmoid: exp on the EUP, one f32 divide on the VPU (tiny head).
    y_ref[...] = 1.0 / (1.0 + jnp.exp(-z))


def _round_up(n, m):
    return ((n + m - 1) // m) * m


def fold_params(params, *, fold=FOLD):
    """One-time param prep: 8-way block-diagonal bf16 weights, lane-tiled f32 biases.

    params: dict with w1,b1,w2,b2,w3,b3,wh,bh; weights [in,out], biases [1,out].
    """
    def block_diag(w):
        # kron(I_fold, w) -> block diagonal (fold*in, fold*out); zeros stay
        # exactly zero in bf16, so the fold is numerically identical to the
        # per-row matmul.
        return jnp.kron(jnp.eye(fold, dtype=jnp.float32),
                        w.astype(jnp.float32)).astype(jnp.bfloat16)

    def tile_bias(b):
        return jnp.tile(b.astype(jnp.float32).reshape(1, -1), (1, fold))

    out = {}
    for name in ("1", "2", "3", "h"):
        out[f"w{name}"] = block_diag(params[f"w{name}"])
        out[f"b{name}"] = tile_bias(params[f"b{name}"])
    return out


def linear_predictor_forward(x, fparams, *, block_rows=256, fold=FOLD):
    """Pallas forward pass of LinearPredictor.

    x: [B, input_size] float32
    fparams: output of fold_params()
    block_rows: folded-row tile size (1 folded row == `fold` batch rows).
    returns: [B, output_size] float32
    """
    B, in_size = x.shape
    w1 = fparams["w1"]
    assert w1.shape[0] == fold * in_size, "fparams fold does not match x"
    out_size = fparams["wh"].shape[1] // fold

    # Pad the batch so it folds cleanly into (Bf, fold*in_size) with Bf a
    # multiple of 8 (sublane granularity).  Padded rows are garbage-in /
    # garbage-out and sliced off at the end; rows are independent.
    B_pad = _round_up(B, fold * 8)
    if B_pad != B:
        x = jnp.pad(x, ((0, B_pad - B), (0, 0)))
    Bf = B_pad // fold
    xf = x.reshape(Bf, fold * in_size)          # free: row-major contiguous

    # Folded batch tile: big enough to amortize per-step overhead, capped so
    # that on v7x the "parallel" axis has >= 2 steps to shard across both TCs.
    tbf = min(block_rows, Bf)
    if Bf >= 16:
        tbf = min(tbf, _round_up(pl.cdiv(Bf, 2), 8))
    tbf = max(tbf, 8)
    grid = (pl.cdiv(Bf, tbf),)

    def resident(shape):
        # Constant block index across the grid -> params stay VMEM-resident
        # (no re-DMA per batch tile).
        return pl.BlockSpec(shape, lambda i: (0, 0))

    yf = pl.pallas_call(
        _mlp_kernel,
        out_shape=jax.ShapeDtypeStruct((Bf, fold * out_size), jnp.float32),
        grid=grid,
        in_specs=[
            pl.BlockSpec((tbf, fold * in_size), lambda i: (i, 0)),   # x: streamed
            resident(fparams["w1"].shape), resident(fparams["b1"].shape),
            resident(fparams["w2"].shape), resident(fparams["b2"].shape),
            resident(fparams["w3"].shape), resident(fparams["b3"].shape),
            resident(fparams["wh"].shape), resident(fparams["bh"].shape),
        ],
        out_specs=pl.BlockSpec((tbf, fold * out_size), lambda i: (i, 0)),
        compiler_params=pltpu.CompilerParams(
            dimension_semantics=("parallel",),      # megacore sharding on v7x
            vmem_limit_bytes=32 * 1024 * 1024,      # v5e default is only 16 MiB
        ),
    )(xf,
      fparams["w1"], fparams["b1"],
      fparams["w2"], fparams["b2"],
      fparams["w3"], fparams["b3"],
      fparams["wh"], fparams["bh"])

    # (Bf, fold*out) is bit-identical in memory to (B_pad, out); unfold + trim.
    return yf.reshape(B_pad, out_size)[:B]


def init_params(key, input_size, output_size):
    """Deterministic init mimicking nn.Linear's U(-1/sqrt(fan_in), 1/sqrt(fan_in))."""
    sizes = [(input_size, 32), (32, 32), (32, 32), (32, output_size)]
    names = ["1", "2", "3", "h"]
    params = {}
    for (fan_in, fan_out), name in zip(sizes, names):
        key, kw, kb = jax.random.split(key, 3)
        bound = 1.0 / jnp.sqrt(jnp.float32(fan_in))
        params[f"w{name}"] = jax.random.uniform(
            kw, (fan_in, fan_out), jnp.float32, -bound, bound)
        params[f"b{name}"] = jax.random.uniform(
            kb, (1, fan_out), jnp.float32, -bound, bound)
    return params


def _reference_forward(x, p):
    h = jnp.maximum(x @ p["w1"] + p["b1"], 0.0)
    h = jnp.maximum(h @ p["w2"] + p["b2"], 0.0)
    h = jnp.maximum(h @ p["w3"] + p["b3"], 0.0)
    return jax.nn.sigmoid(h @ p["wh"] + p["bh"])


# TODO(synk): smooth_l1_loss + RMSprop from the module are training-only and
# not part of forward(); they are intentionally not implemented here.

if __name__ == "__main__":
    key = jax.random.PRNGKey(0)
    batch, input_size, output_size = 8, 16, 4

    key, kx = jax.random.split(key)
    x = jax.random.normal(kx, (batch, input_size), jnp.float32)
    params = init_params(key, input_size, output_size)
    fparams = fold_params(params)           # one-time fold + bf16 cast

    y = linear_predictor_forward(x, fparams)
    jax.block_until_ready(y)

    y_ref = _reference_forward(x, params)
    assert y.shape == (batch, output_size)
    # Tolerance vs the f32 reference is loosened because the MXU operands are
    # bf16 (accumulation stays f32).
    max_err = jnp.max(jnp.abs(y - y_ref))
    assert jnp.allclose(y, y_ref, atol=2e-2, rtol=2e-2), f"max abs err {max_err:.3e}"

    print("KERNEL_OK")
</pallas_src>

<mosaic_0001>
module attributes {stable_mosaic.version = 11 : i64} {
  func.func @_mlp_kernel(%arg0: i32, %arg1: memref<8x128xf32, #tpu.memory_space<vmem>>, %arg2: memref<128x256xbf16, #tpu.memory_space<vmem>>, %arg3: memref<1x256xf32, #tpu.memory_space<vmem>>, %arg4: memref<256x256xbf16, #tpu.memory_space<vmem>>, %arg5: memref<1x256xf32, #tpu.memory_space<vmem>>, %arg6: memref<256x256xbf16, #tpu.memory_space<vmem>>, %arg7: memref<1x256xf32, #tpu.memory_space<vmem>>, %arg8: memref<256x32xbf16, #tpu.memory_space<vmem>>, %arg9: memref<1x32xf32, #tpu.memory_space<vmem>>, %arg10: memref<8x32xf32, #tpu.memory_space<vmem>>) attributes {dimension_semantics = [#tpu.dimension_semantics<parallel>], iteration_bounds = array<i64: 1>, scalar_prefetch = 0 : i64, scratch_operands = 0 : i64, tpu.core_type = #tpu.core_type<tc>, window_params = [{transform_indices = @transform_0, window_bounds = array<i64: 8, 128>}, {pipeline_mode = #tpu.pipeline_mode<synchronous>, transform_indices = @transform_1, window_bounds = array<i64: 128, 256>}, {pipeline_mode = #tpu.pipeline_mode<synchronous>, transform_indices = @transform_2, window_bounds = array<i64: 1, 256>}, {pipeline_mode = #tpu.pipeline_mode<synchronous>, transform_indices = @transform_3, window_bounds = array<i64: 256, 256>}, {pipeline_mode = #tpu.pipeline_mode<synchronous>, transform_indices = @transform_4, window_bounds = array<i64: 1, 256>}, {pipeline_mode = #tpu.pipeline_mode<synchronous>, transform_indices = @transform_5, window_bounds = array<i64: 256, 256>}, {pipeline_mode = #tpu.pipeline_mode<synchronous>, transform_indices = @transform_6, window_bounds = array<i64: 1, 256>}, {pipeline_mode = #tpu.pipeline_mode<synchronous>, transform_indices = @transform_7, window_bounds = array<i64: 256, 32>}, {pipeline_mode = #tpu.pipeline_mode<synchronous>, transform_indices = @transform_8, window_bounds = array<i64: 1, 32>}, {transform_indices = @transform_9, window_bounds = array<i64: 8, 32>}]} {
    %c0 = arith.constant 0 : index
    %c0_0 = arith.constant 0 : index
    %0 = vector.load %arg1[%c0, %c0_0] : memref<8x128xf32, #tpu.memory_space<vmem>>, vector<8x128xf32>
    %1 = arith.truncf %0 : vector<8x128xf32> to vector<8x128xbf16>
    %c0_1 = arith.constant 0 : index
    %c0_2 = arith.constant 0 : index
    %2 = vector.load %arg2[%c0_1, %c0_2] : memref<128x256xbf16, #tpu.memory_space<vmem>>, vector<128x256xbf16>
    %cst = arith.constant dense<0.000000e+00> : vector<8x256xf32>
    %3 = tpu.matmul %1, %2, %cst {dimension_numbers = #tpu.dot_dimension_numbers<[1], [0], [0], [1], [0, 0, 1, 1], [], []>} : vector<8x128xbf16>, vector<128x256xbf16>, vector<8x256xf32> -> vector<8x256xf32>
    %c0_3 = arith.constant 0 : index
    %c0_4 = arith.constant 0 : index
    %4 = vector.load %arg3[%c0_3, %c0_4] : memref<1x256xf32, #tpu.memory_space<vmem>>, vector<1x256xf32>
    %5 = vector.broadcast %4 : vector<1x256xf32> to vector<8x256xf32>
    %6 = arith.addf %3, %5 : vector<8x256xf32>
    %cst_5 = arith.constant 0.000000e+00 : f32
    %7 = vector.broadcast %cst_5 : f32 to vector<8x256xf32>
    %8 = arith.maximumf %6, %7 : vector<8x256xf32>
    %9 = arith.truncf %8 : vector<8x256xf32> to vector<8x256xbf16>
    %c0_6 = arith.constant 0 : index
    %c0_7 = arith.constant 0 : index
    %10 = vector.load %arg4[%c0_6, %c0_7] : memref<256x256xbf16, #tpu.memory_space<vmem>>, vector<256x256xbf16>
    %cst_8 = arith.constant dense<0.000000e+00> : vector<8x256xf32>
    %11 = tpu.matmul %9, %10, %cst_8 {dimension_numbers = #tpu.dot_dimension_numbers<[1], [0], [0], [1], [0, 0, 1, 1], [], []>} : vector<8x256xbf16>, vector<256x256xbf16>, vector<8x256xf32> -> vector<8x256xf32>
    %c0_9 = arith.constant 0 : index
    %c0_10 = arith.constant 0 : index
    %12 = vector.load %arg5[%c0_9, %c0_10] : memref<1x256xf32, #tpu.memory_space<vmem>>, vector<1x256xf32>
    %13 = vector.broadcast %12 : vector<1x256xf32> to vector<8x256xf32>
    %14 = arith.addf %11, %13 : vector<8x256xf32>
    %cst_11 = arith.constant 0.000000e+00 : f32
    %15 = vector.broadcast %cst_11 : f32 to vector<8x256xf32>
    %16 = arith.maximumf %14, %15 : vector<8x256xf32>
    %17 = arith.truncf %16 : vector<8x256xf32> to vector<8x256xbf16>
    %c0_12 = arith.constant 0 : index
    %c0_13 = arith.constant 0 : index
    %18 = vector.load %arg6[%c0_12, %c0_13] : memref<256x256xbf16, #tpu.memory_space<vmem>>, vector<256x256xbf16>
    %cst_14 = arith.constant dense<0.000000e+00> : vector<8x256xf32>
    %19 = tpu.matmul %17, %18, %cst_14 {dimension_numbers = #tpu.dot_dimension_numbers<[1], [0], [0], [1], [0, 0, 1, 1], [], []>} : vector<8x256xbf16>, vector<256x256xbf16>, vector<8x256xf32> -> vector<8x256xf32>
    %c0_15 = arith.constant 0 : index
    %c0_16 = arith.constant 0 : index
    %20 = vector.load %arg7[%c0_15, %c0_16] : memref<1x256xf32, #tpu.memory_space<vmem>>, vector<1x256xf32>
    %21 = vector.broadcast %20 : vector<1x256xf32> to vector<8x256xf32>
    %22 = arith.addf %19, %21 : vector<8x256xf32>
    %cst_17 = arith.constant 0.000000e+00 : f32
    %23 = vector.broadcast %cst_17 : f32 to vector<8x256xf32>
    %24 = arith.maximumf %22, %23 : vector<8x256xf32>
    %25 = arith.truncf %24 : vector<8x256xf32> to vector<8x256xbf16>
    %c0_18 = arith.constant 0 : index
    %c0_19 = arith.constant 0 : index
    %26 = vector.load %arg8[%c0_18, %c0_19] : memref<256x32xbf16, #tpu.memory_space<vmem>>, vector<256x32xbf16>
    %cst_20 = arith.constant dense<0.000000e+00> : vector<8x32xf32>
    %27 = tpu.matmul %25, %26, %cst_20 {dimension_numbers = #tpu.dot_dimension_numbers<[1], [0], [0], [1], [0, 0, 1, 1], [], []>} : vector<8x256xbf16>, vector<256x32xbf16>, vector<8x32xf32> -> vector<8x32xf32>
    %c0_21 = arith.constant 0 : index
    %c0_22 = arith.constant 0 : index
    %28 = vector.load %arg9[%c0_21, %c0_22] : memref<1x32xf32, #tpu.memory_space<vmem>>, vector<1x32xf32>
    %29 = vector.broadcast %28 : vector<1x32xf32> to vector<8x32xf32>
    %30 = arith.addf %27, %29 : vector<8x32xf32>
    %cst_23 = arith.constant 0.000000e+00 : f32
    %31 = vector.broadcast %cst_23 : f32 to vector<8x32xf32>
    %32 = arith.subf %31, %30 : vector<8x32xf32>
    %33 = math.exp %32 : vector<8x32xf32>
    %cst_24 = arith.constant 1.000000e+00 : f32
    %34 = vector.broadcast %cst_24 : f32 to vector<8x32xf32>
    %35 = arith.addf %34, %33 : vector<8x32xf32>
    %cst_25 = arith.constant 1.000000e+00 : f32
    %36 = vector.broadcast %cst_25 : f32 to vector<8x32xf32>
    %37 = arith.divf %36, %35 : vector<8x32xf32>
    %c0_26 = arith.constant 0 : index
    %c0_27 = arith.constant 0 : index
    %38 = vector.load %arg10[%c0_26, %c0_27] : memref<8x32xf32, #tpu.memory_space<vmem>>, vector<8x32xf32>
    tpu.vector_store %arg10[%c0_26, %c0_27], %37 {strides = array<i32>} : memref<8x32xf32, #tpu.memory_space<vmem>>, vector<8x32xf32>,
    return
  }
  func.func @transform_0(%arg0: i32) -> (i32, i32) {
    %c0_i32 = arith.constant 0 : i32
    %c0_i32_0 = arith.constant 0 : i32
    return %arg0, %c0_i32 : i32, i32
  }
  func.func @transform_1(%arg0: i32) -> (i32, i32) {
    %c0_i32 = arith.constant 0 : i32
    %c0_i32_0 = arith.constant 0 : i32
    %c0_i32_1 = arith.constant 0 : i32
    return %c0_i32, %c0_i32_0 : i32, i32
  }
  func.func @transform_2(%arg0: i32) -> (i32, i32) {
    %c0_i32 = arith.constant 0 : i32
    %c0_i32_0 = arith.constant 0 : i32
    %c0_i32_1 = arith.constant 0 : i32
    return %c0_i32, %c0_i32_0 : i32, i32
  }
  func.func @transform_3(%arg0: i32) -> (i32, i32) {
    %c0_i32 = arith.constant 0 : i32
    %c0_i32_0 = arith.constant 0 : i32
    %c0_i32_1 = arith.constant 0 : i32
    return %c0_i32, %c0_i32_0 : i32, i32
  }
  func.func @transform_4(%arg0: i32) -> (i32, i32) {
    %c0_i32 = arith.constant 0 : i32
    %c0_i32_0 = arith.constant 0 : i32
    %c0_i32_1 = arith.constant 0 : i32
    return %c0_i32, %c0_i32_0 : i32, i32
  }
  func.func @transform_5(%arg0: i32) -> (i32, i32) {
    %c0_i32 = arith.constant 0 : i32
    %c0_i32_0 = arith.constant 0 : i32
    %c0_i32_1 = arith.constant 0 : i32
    return %c0_i32, %c0_i32_0 : i32, i32
  }
  func.func @transform_6(%arg0: i32) -> (i32, i32) {
    %c0_i32 = arith.constant 0 : i32
    %c0_i32_0 = arith.constant 0 : i32
    %c0_i32_1 = arith.constant 0 : i32
    return %c0_i32, %c0_i32_0 : i32, i32
  }
  func.func @transform_7(%arg0: i32) -> (i32, i32) {
    %c0_i32 = arith.constant 0 : i32
    %c0_i32_0 = arith.constant 0 : i32
    %c0_i32_1 = arith.constant 0 : i32
    return %c0_i32, %c0_i32_0 : i32, i32
  }
  func.func @transform_8(%arg0: i32) -> (i32, i32) {
    %c0_i32 = arith.constant 0 : i32
    %c0_i32_0 = arith.constant 0 : i32
    %c0_i32_1 = arith.constant 0 : i32
    return %c0_i32, %c0_i32_0 : i32, i32
  }
  func.func @transform_9(%arg0: i32) -> (i32, i32) {
    %c0_i32 = arith.constant 0 : i32
    %c0_i32_0 = arith.constant 0 : i32
    return %arg0, %c0_i32 : i32, i32
  }
}

</mosaic_0001>

<llo_original>
// kernel: tpu_custom_call.1
$region0: #{tpu_custom_call.1}
  #allocation0 [shape = 'u32[]', space=smem, size = 0x4, offset = 0x4, fixed_abs, tag = 'smem constant byte address 0x4 - core index']
  #allocation1 [shape = 'u32[144,128]{1,0:T(1,128)}', space=vmem, size = 0x12000, scoped, tag = 'internal scratch']
  %s0 = inlined_call_operand.vmem [shape: f32[8,128], index: 0, kind: input, shape index: {}]
  %s1 = inlined_call_operand.vmem [shape: bf16[128,256], index: 1, kind: input, shape index: {}]
  %s2 = inlined_call_operand.vmem [shape: f32[1,256], index: 2, kind: input, shape index: {}]
  %s3 = inlined_call_operand.hbm [shape: bf16[256,256], index: 3, kind: input, shape index: {}]
  %s4 = inlined_call_operand.vmem [shape: f32[1,256], index: 4, kind: input, shape index: {}]
  %s5 = inlined_call_operand.hbm [shape: bf16[256,256], index: 5, kind: input, shape index: {}]
  %s6 = inlined_call_operand.vmem [shape: f32[1,256], index: 6, kind: input, shape index: {}]
  %s7 = inlined_call_operand.vmem [shape: bf16[256,32], index: 7, kind: input, shape index: {}]
  %s8 = inlined_call_operand.vmem [shape: f32[1,32], index: 8, kind: input, shape index: {}]
  %s9 = inlined_call_operand.hbm [shape: f32[8,32], index: 9, kind: output, shape index: {}]
  %s10 = sld [smem:[#allocation0]]
  $region54: #{tpu_custom_call.1} parent=0
    _
  %s12 = ssub.s32 1, %s10
  %s13 = scalar_select 0, %s12, %s10
  $region1: #{tpu_custom_call.1} parent=0
    #allocation2 [shape = 'u8[131072]{0}', space=vmem, size = 0x20000, scoped, tag = 'input window, operand 3, single buffered']
    #allocation3 [shape = 's32[1]{0}', space=sflag, size = 0x4, scoped, tag = 'scoped memory for tpu_custom_call.1']
    #allocation4 [shape = 's32[1]{0}', space=sflag, size = 0x4, scoped, tag = 'scoped memory for tpu_custom_call.1']
    #allocation5 [shape = 'u8[131072]{0}', space=vmem, size = 0x20000, scoped, tag = 'input window, operand 5, single buffered']
    #allocation6 [shape = 's32[1]{0}', space=sflag, size = 0x4, scoped, tag = 'scoped memory for tpu_custom_call.1']
    #allocation7 [shape = 'u8[4096]{0}', space=vmem, size = 0x1000, scoped, tag = 'output window, operand 0, single buffered']
    %14 = vsyncpa [#allocation3], 0
    %15 = vsyncpa [#allocation6], 0
    %16 = vsyncpa [#allocation4], 0
    // Predicated region
    $region2: #{tpu_custom_call.1} parent=1 // pred_check
      _
    $region3: #{tpu_custom_call.1} parent=1 // pred_check_branch
      %18 = sbr.rel (0) target = $region5
    $region4: #{tpu_custom_call.1} parent=1 // pred_region
      _
    $region5: #{tpu_custom_call.1} parent=1 // pred_fallthru
      _
    // Predicated region
    $region6: #{tpu_custom_call.1} parent=1 // pred_check
      _
    $region7: #{tpu_custom_call.1} parent=1 // pred_check_branch
      %20 = sbr.rel (0) target = $region9
    $region8: #{tpu_custom_call.1} parent=1 // pred_region
      _
    $region9: #{tpu_custom_call.1} parent=1 // pred_fallthru
      _
    // Predicated region
    $region10: #{tpu_custom_call.1} parent=1 // pred_check
      _
    $region11: #{tpu_custom_call.1} parent=1 // pred_check_branch
      %22 = sbr.rel (0) target = $region13
    $region12: #{tpu_custom_call.1} parent=1 // pred_region
      _
    $region13: #{tpu_custom_call.1} parent=1 // pred_fallthru
      _
    // Predicated region
    $region14: #{tpu_custom_call.1} parent=1 // pred_check
      _
    $region15: #{tpu_custom_call.1} parent=1 // pred_check_branch
      %24 = sbr.rel (0) target = $region17
    $region16: #{tpu_custom_call.1} parent=1 // pred_region
      %s26 = ssub.s32 4096, 4096
      %27 = vsyncadd [#allocation3], %s26
      %s28 = sshll.u32 [#allocation2], 4
      %s29 = int_to_ptr.vmem [resolvable:$true] %s28
      %34 = dma.hbm_to_vmem [thread:$0]  %s3, 4096, %s29, [#allocation3], 128, 128, 8
    $region17: #{tpu_custom_call.1} parent=1 // pred_fallthru
      _
    // Predicated region
    $region18: #{tpu_custom_call.1} parent=1 // pred_check
      _
    $region19: #{tpu_custom_call.1} parent=1 // pred_check_branch
      %36 = sbr.rel (0) target = $region21
    $region20: #{tpu_custom_call.1} parent=1 // pred_region
      _
    $region21: #{tpu_custom_call.1} parent=1 // pred_fallthru
      _
    // Predicated region
    $region22: #{tpu_custom_call.1} parent=1 // pred_check
      _
    $region23: #{tpu_custom_call.1} parent=1 // pred_check_branch
      %38 = sbr.rel (0) target = $region25
    $region24: #{tpu_custom_call.1} parent=1 // pred_region
      %s40 = ssub.s32 4096, 4096
      %41 = vsyncadd [#allocation6], %s40
      %s42 = sshll.u32 [#allocation5], 4
      %s43 = int_to_ptr.vmem [resolvable:$true] %s42
      %48 = dma.hbm_to_vmem [thread:$0]  %s5, 4096, %s43, [#allocation6], 128, 128, 8
    $region25: #{tpu_custom_call.1} parent=1 // pred_fallthru
      _
    // Predicated region
    $region26: #{tpu_custom_call.1} parent=1 // pred_check
      _
    $region27: #{tpu_custom_call.1} parent=1 // pred_check_branch
      %50 = sbr.rel (0) target = $region29
    $region28: #{tpu_custom_call.1} parent=1 // pred_region
      _
    $region29: #{tpu_custom_call.1} parent=1 // pred_fallthru
      _
    // Predicated region
    $region30: #{tpu_custom_call.1} parent=1 // pred_check
      _
    $region31: #{tpu_custom_call.1} parent=1 // pred_check_branch
      %52 = sbr.rel (0) target = $region33
    $region32: #{tpu_custom_call.1} parent=1 // pred_region
      _
    $region33: #{tpu_custom_call.1} parent=1 // pred_fallthru
      _
    // Predicated region
    $region34: #{tpu_custom_call.1} parent=1 // pred_check
      _
    $region35: #{tpu_custom_call.1} parent=1 // pred_check_branch
      %54 = sbr.rel (0) target = $region37
    $region36: #{tpu_custom_call.1} parent=1 // pred_region
      _
    $region37: #{tpu_custom_call.1} parent=1 // pred_fallthru
      _
    // Predicated region
    $region38: #{tpu_custom_call.1} parent=1 // pred_check
      _
    $region39: #{tpu_custom_call.1} parent=1 // pred_check_branch
      %56 = sbr.rel (0) target = $region41
    $region40: #{tpu_custom_call.1} parent=1 // pred_region
      %57 = dma.done [#allocation3], 4096
    $region41: #{tpu_custom_call.1} parent=1 // pred_fallthru
      _
    // Predicated region
    $region42: #{tpu_custom_call.1} parent=1 // pred_check
      _
    $region43: #{tpu_custom_call.1} parent=1 // pred_check_branch
      %59 = sbr.rel (0) target = $region45
    $region44: #{tpu_custom_call.1} parent=1 // pred_region
      %60 = dma.done [#allocation6], 4096
    $region45: #{tpu_custom_call.1} parent=1 // pred_fallthru
      _
    %v62 = vld [vmem:[%s0] sm:$0xff]
    %v63 = vpack.c.bf16 %v62, %v62
    %v64 = vld [vmem:[%s1] sm:$0xff]
    %v65 = vld [vmem:[%s1 + $0x8] sm:$0xff]
    %v66 = vld [vmem:[%s1 + $0x10] sm:$0xff]
    %v67 = vld [vmem:[%s1 + $0x18] sm:$0xff]
    %v68 = vld [vmem:[%s1 + $0x20] sm:$0xff]
    %v69 = vld [vmem:[%s1 + $0x28] sm:$0xff]
    %v70 = vld [vmem:[%s1 + $0x30] sm:$0xff]
    %v71 = vld [vmem:[%s1 + $0x38] sm:$0xff]
    %v72 = vld [vmem:[%s1 + $0x40] sm:$0xff]
    %v73 = vld [vmem:[%s1 + $0x48] sm:$0xff]
    %v74 = vld [vmem:[%s1 + $0x50] sm:$0xff]
    %v75 = vld [vmem:[%s1 + $0x58] sm:$0xff]
    %v76 = vld [vmem:[%s1 + $0x60] sm:$0xff]
    %v77 = vld [vmem:[%s1 + $0x68] sm:$0xff]
    %v78 = vld [vmem:[%s1 + $0x70] sm:$0xff]
    %v79 = vld [vmem:[%s1 + $0x78] sm:$0xff]
    %v80 = vld [vmem:[%s2] sm:$0x3]
    %v82 = vlaneseq
    %v83 = vshrl.u32 %v82, 7
    %v84 = vsub.s32 0, %v83
    %v85 = vrot.slane %v80, %v84
    %v86 = vlaneseq
    %v87 = vshrl.u32 %v86, 7
    %v88 = vsub.s32 1, %v87
    %v89 = vrot.slane %v80, %v88
    %v108 = vunpack.c.l.b16 %v64
    %v109 = vunpack.c.h.b16 %v64
    %v110 = vunpack.c.l.b16 %v65
    %v111 = vunpack.c.h.b16 %v65
    %v112 = vunpack.c.l.b16 %v66
    %v113 = vunpack.c.h.b16 %v66
    %v114 = vunpack.c.l.b16 %v67
    %v115 = vunpack.c.h.b16 %v67
    %v116 = vunpack.c.l.b16 %v68
    %v117 = vunpack.c.h.b16 %v68
    %v118 = vunpack.c.l.b16 %v69
    %v119 = vunpack.c.h.b16 %v69
    %v120 = vunpack.c.l.b16 %v70
    %v121 = vunpack.c.h.b16 %v70
    %v122 = vunpack.c.l.b16 %v71
    %v123 = vunpack.c.h.b16 %v71
    %v124 = vunpack.c.l.b16 %v72
    %v125 = vunpack.c.h.b16 %v72
    %v126 = vunpack.c.l.b16 %v73
    %v127 = vunpack.c.h.b16 %v73
    %v128 = vunpack.c.l.b16 %v74
    %v129 = vunpack.c.h.b16 %v74
    %v130 = vunpack.c.l.b16 %v75
    %v131 = vunpack.c.h.b16 %v75
    %v132 = vunpack.c.l.b16 %v76
    %v133 = vunpack.c.h.b16 %v76
    %v134 = vunpack.c.l.b16 %v77
    %v135 = vunpack.c.h.b16 %v77
    %v136 = vunpack.c.l.b16 %v78
    %v137 = vunpack.c.h.b16 %v78
    %v138 = vunpack.c.l.b16 %v79
    %v139 = vunpack.c.h.b16 %v79
    %v140 = vpack.c.b16 %v110, %v108
    %v141 = vpack.c.b16 %v111, %v109
    %v142 = vpack.c.b16 %v114, %v112
    %v143 = vpack.c.b16 %v115, %v113
    %v144 = vpack.c.b16 %v118, %v116
    %v145 = vpack.c.b16 %v119, %v117
    %v146 = vpack.c.b16 %v122, %v120
    %v147 = vpack.c.b16 %v123, %v121
    %v148 = vpack.c.b16 %v126, %v124
    %v149 = vpack.c.b16 %v127, %v125
    %v150 = vpack.c.b16 %v130, %v128
    %v151 = vpack.c.b16 %v131, %v129
    %v152 = vpack.c.b16 %v134, %v132
    %v153 = vpack.c.b16 %v135, %v133
    %v154 = vpack.c.b16 %v138, %v136
    %v155 = vpack.c.b16 %v139, %v137
    %172 = vmatprep.subr.bf16.mxu0 %v155
    %173 = vmatpush1.bf16.msra.mxu0 %v154
    %174 = vmatprep.subr.bf16.mxu0 %v153
    %175 = vmatpush1.bf16.msra.mxu0 %v152
    %176 = vmatprep.subr.bf16.mxu0 %v151
    %177 = vmatpush1.bf16.msra.mxu0 %v150
    %178 = vmatprep.subr.bf16.mxu0 %v149
    %179 = vmatpush1.bf16.msra.mxu0 %v148
    %180 = vmatprep.subr.bf16.mxu0 %v147
    %181 = vmatpush1.bf16.msra.mxu0 %v146
    %182 = vmatprep.subr.bf16.mxu0 %v145
    %183 = vmatpush1.bf16.msra.mxu0 %v144
    %184 = vmatprep.subr.bf16.mxu0 %v143
    %185 = vmatpush1.bf16.msra.mxu0 %v142
    %186 = vmatprep.subr.bf16.mxu0 %v141
    %187 = vmatpush1.bf16.msra.mxu0 %v140
    %188 = vmatprep.subr.bf16.mxu0 0
    %189 = vmatpush2.bf16.msra.mxu0 0
    %190 = vmatprep.subr.bf16.mxu0 0
    %191 = vmatpush2.bf16.msra.mxu0 0
    %192 = vmatprep.subr.bf16.mxu0 0
    %193 = vmatpush2.bf16.msra.mxu0 0
    %194 = vmatprep.subr.bf16.mxu0 0
    %195 = vmatpush2.bf16.msra.mxu0 0
    %196 = vmatprep.subr.bf16.mxu0 0
    %197 = vmatpush2.bf16.msra.mxu0 0
    %198 = vmatprep.subr.bf16.mxu0 0
    %199 = vmatpush2.bf16.msra.mxu0 0
    %200 = vmatprep.subr.bf16.mxu0 0
    %201 = vmatpush2.bf16.msra.mxu0 0
    %202 = vmatprep.subr.bf16.mxu0 0
    %203 = vmatpush2.bf16.msra.mxu0 0
    %204 = vmatprep.mubr.bf16.mxu0 0
    %205 = vmatmul.mubr.bf16.gmra.mxu0 %v63
    %v206 = vpop.f32.mrf.mxu0
    %v207 = vadd.f32 %v85, %v206
    %v208 = vpop.f32.mrf.mxu0
    %v209 = vadd.f32 %v89, %v208
    %v210 = vpop.f32.mrf.mxu0
    %v211 = vpop.f32.mrf.mxu0
    %212 = vdwg.mxu0
    %v213 = vmax.f32 %v207, 0.0
    %v214 = vmax.f32 %v209, 0.0
    %v215 = vpack.c.bf16 %v213, %v213
    %v216 = vpack.c.bf16 %v214, %v214
    %v217 = vld [vmem:[#allocation2] sm:$0xff]
    %v218 = vld [vmem:[#allocation2 + $0x8] sm:$0xff]
    %v219 = vld [vmem:[#allocation2 + $0x10] sm:$0xff]
    %v220 = vld [vmem:[#allocation2 + $0x18] sm:$0xff]
    %v221 = vld [vmem:[#allocation2 + $0x20] sm:$0xff]
    %v222 = vld [vmem:[#allocation2 + $0x28] sm:$0xff]
    %v223 = vld [vmem:[#allocation2 + $0x30] sm:$0xff]
    %v224 = vld [vmem:[#allocation2 + $0x38] sm:$0xff]
    %v225 = vld [vmem:[#allocation2 + $0x40] sm:$0xff]
    %v226 = vld [vmem:[#allocation2 + $0x48] sm:$0xff]
    %v227 = vld [vmem:[#allocation2 + $0x50] sm:$0xff]
    %v228 = vld [vmem:[#allocation2 + $0x58] sm:$0xff]
    %v229 = vld [vmem:[#allocation2 + $0x60] sm:$0xff]
    %v230 = vld [vmem:[#allocation2 + $0x68] sm:$0xff]
    %v231 = vld [vmem:[#allocation2 + $0x70] sm:$0xff]
    %v232 = vld [vmem:[#allocation2 + $0x78] sm:$0xff]
    %v233 = vld [vmem:[#allocation2 + $0x80] sm:$0xff]
    %v234 = vld [vmem:[#allocation2 + $0x88] sm:$0xff]
    %v235 = vld [vmem:[#allocation2 + $0x90] sm:$0xff]
    %v236 = vld [vmem:[#allocation2 + $0x98] sm:$0xff]
    %v237 = vld [vmem:[#allocation2 + $0xa0] sm:$0xff]
    %v238 = vld [vmem:[#allocation2 + $0xa8] sm:$0xff]
    %v239 = vld [vmem:[#allocation2 + $0xb0] sm:$0xff]
    %v240 = vld [vmem:[#allocation2 + $0xb8] sm:$0xff]
    %v241 = vld [vmem:[#allocation2 + $0xc0] sm:$0xff]
    %v242 = vld [vmem:[#allocation2 + $0xc8] sm:$0xff]
    %v243 = vld [vmem:[#allocation2 + $0xd0] sm:$0xff]
    %v244 = vld [vmem:[#allocation2 + $0xd8] sm:$0xff]
    %v245 = vld [vmem:[#allocation2 + $0xe0] sm:$0xff]
    %v246 = vld [vmem:[#allocation2 + $0xe8] sm:$0xff]
    %v247 = vld [vmem:[#allocation2 + $0xf0] sm:$0xff]
    %v248 = vld [vmem:[#allocation2 + $0xf8] sm:$0xff]
    %v249 = vld [vmem:[%s4] sm:$0x3]
    %v251 = vlaneseq
    %v252 = vshrl.u32 %v251, 7
    %v253 = vsub.s32 0, %v252
    %v254 = vrot.slane %v249, %v253
    %v255 = vlaneseq
    %v256 = vshrl.u32 %v255, 7
    %v257 = vsub.s32 1, %v256
    %v258 = vrot.slane %v249, %v257
    %v293 = vunpack.c.l.b16 %v217
    %v294 = vunpack.c.h.b16 %v217
    %v295 = vunpack.c.l.b16 %v218
    %v296 = vunpack.c.h.b16 %v218
    %v297 = vunpack.c.l.b16 %v219
    %v298 = vunpack.c.h.b16 %v219
    %v299 = vunpack.c.l.b16 %v220
    %v300 = vunpack.c.h.b16 %v220
    %v301 = vunpack.c.l.b16 %v221
    %v302 = vunpack.c.h.b16 %v221
    %v303 = vunpack.c.l.b16 %v222
    %v304 = vunpack.c.h.b16 %v222
    %v305 = vunpack.c.l.b16 %v223
    %v306 = vunpack.c.h.b16 %v223
    %v307 = vunpack.c.l.b16 %v224
    %v308 = vunpack.c.h.b16 %v224
    %v309 = vunpack.c.l.b16 %v225
    %v310 = vunpack.c.h.b16 %v225
    %v311 = vunpack.c.l.b16 %v226
    %v312 = vunpack.c.h.b16 %v226
    %v313 = vunpack.c.l.b16 %v227
    %v314 = vunpack.c.h.b16 %v227
    %v315 = vunpack.c.l.b16 %v228
    %v316 = vunpack.c.h.b16 %v228
    %v317 = vunpack.c.l.b16 %v229
    %v318 = vunpack.c.h.b16 %v229
    %v319 = vunpack.c.l.b16 %v230
    %v320 = vunpack.c.h.b16 %v230
    %v321 = vunpack.c.l.b16 %v231
    %v322 = vunpack.c.h.b16 %v231
    %v323 = vunpack.c.l.b16 %v232
    %v324 = vunpack.c.h.b16 %v232
    %v325 = vunpack.c.l.b16 %v233
    %v326 = vunpack.c.h.b16 %v233
    %v327 = vunpack.c.l.b16 %v234
    %v328 = vunpack.c.h.b16 %v234
    %v329 = vunpack.c.l.b16 %v235
    %v330 = vunpack.c.h.b16 %v235
    %v331 = vunpack.c.l.b16 %v236
    %v332 = vunpack.c.h.b16 %v236
    %v333 = vunpack.c.l.b16 %v237
    %v334 = vunpack.c.h.b16 %v237
    %v335 = vunpack.c.l.b16 %v238
    %v336 = vunpack.c.h.b16 %v238
    %v337 = vunpack.c.l.b16 %v239
    %v338 = vunpack.c.h.b16 %v239
    %v339 = vunpack.c.l.b16 %v240
    %v340 = vunpack.c.h.b16 %v240
    %v341 = vunpack.c.l.b16 %v241
    %v342 = vunpack.c.h.b16 %v241
    %v343 = vunpack.c.l.b16 %v242
    %v344 = vunpack.c.h.b16 %v242
    %v345 = vunpack.c.l.b16 %v243
    %v346 = vunpack.c.h.b16 %v243
    %v347 = vunpack.c.l.b16 %v244
    %v348 = vunpack.c.h.b16 %v244
    %v349 = vunpack.c.l.b16 %v245
    %v350 = vunpack.c.h.b16 %v245
    %v351 = vunpack.c.l.b16 %v246
    %v352 = vunpack.c.h.b16 %v246
    %v353 = vunpack.c.l.b16 %v247
    %v354 = vunpack.c.h.b16 %v247
    %v355 = vunpack.c.l.b16 %v248
    %v356 = vunpack.c.h.b16 %v248
    %v357 = vpack.c.b16 %v295, %v293
    %v358 = vpack.c.b16 %v296, %v294
    %v359 = vpack.c.b16 %v299, %v297
    %v360 = vpack.c.b16 %v300, %v298
    %v361 = vpack.c.b16 %v303, %v301
    %v362 = vpack.c.b16 %v304, %v302
    %v363 = vpack.c.b16 %v307, %v305
    %v364 = vpack.c.b16 %v308, %v306
    %v365 = vpack.c.b16 %v311, %v309
    %v366 = vpack.c.b16 %v312, %v310
    %v367 = vpack.c.b16 %v315, %v313
    %v368 = vpack.c.b16 %v316, %v314
    %v369 = vpack.c.b16 %v319, %v317
    %v370 = vpack.c.b16 %v320, %v318
    %v371 = vpack.c.b16 %v323, %v321
    %v372 = vpack.c.b16 %v324, %v322
    %v373 = vpack.c.b16 %v327, %v325
    %v374 = vpack.c.b16 %v328, %v326
    %v375 = vpack.c.b16 %v331, %v329
    %v376 = vpack.c.b16 %v332, %v330
    %v377 = vpack.c.b16 %v335, %v333
    %v378 = vpack.c.b16 %v336, %v334
    %v379 = vpack.c.b16 %v339, %v337
    %v380 = vpack.c.b16 %v340, %v338
    %v381 = vpack.c.b16 %v343, %v341
    %v382 = vpack.c.b16 %v344, %v342
    %v383 = vpack.c.b16 %v347, %v345
    %v384 = vpack.c.b16 %v348, %v346
    %v385 = vpack.c.b16 %v351, %v349
    %v386 = vpack.c.b16 %v352, %v350
    %v387 = vpack.c.b16 %v355, %v353
    %v388 = vpack.c.b16 %v356, %v354
    %421 = vmatprep.subr.bf16.mxu0 %v372
    %422 = vmatpush1.bf16.msra.mxu0 %v371
    %423 = vmatprep.subr.bf16.mxu0 %v370
    %424 = vmatpush1.bf16.msra.mxu0 %v369
    %425 = vmatprep.subr.bf16.mxu0 %v368
    %426 = vmatpush1.bf16.msra.mxu0 %v367
    %427 = vmatprep.subr.bf16.mxu0 %v366
    %428 = vmatpush1.bf16.msra.mxu0 %v365
    %429 = vmatprep.subr.bf16.mxu0 %v364
    %430 = vmatpush1.bf16.msra.mxu0 %v363
    %431 = vmatprep.subr.bf16.mxu0 %v362
    %432 = vmatpush1.bf16.msra.mxu0 %v361
    %433 = vmatprep.subr.bf16.mxu0 %v360
    %434 = vmatpush1.bf16.msra.mxu0 %v359
    %435 = vmatprep.subr.bf16.mxu0 %v358
    %436 = vmatpush1.bf16.msra.mxu0 %v357
    %437 = vmatprep.subr.bf16.mxu0 %v388
    %438 = vmatpush2.bf16.msra.mxu0 %v387
    %439 = vmatprep.subr.bf16.mxu0 %v386
    %440 = vmatpush2.bf16.msra.mxu0 %v385
    %441 = vmatprep.subr.bf16.mxu0 %v384
    %442 = vmatpush2.bf16.msra.mxu0 %v383
    %443 = vmatprep.subr.bf16.mxu0 %v382
    %444 = vmatpush2.bf16.msra.mxu0 %v381
    %445 = vmatprep.subr.bf16.mxu0 %v380
    %446 = vmatpush2.bf16.msra.mxu0 %v379
    %447 = vmatprep.subr.bf16.mxu0 %v378
    %448 = vmatpush2.bf16.msra.mxu0 %v377
    %449 = vmatprep.subr.bf16.mxu0 %v376
    %450 = vmatpush2.bf16.msra.mxu0 %v375
    %451 = vmatprep.subr.bf16.mxu0 %v374
    %452 = vmatpush2.bf16.msra.mxu0 %v373
    %453 = vmatprep.mubr.bf16.mxu0 %v216
    %454 = vmatmul.mubr.bf16.gmra.mxu0 %v215
    %v455 = vpop.f32.mrf.mxu0
    %v456 = vadd.f32 %v254, %v455
    %v457 = vpop.f32.mrf.mxu0
    %v458 = vadd.f32 %v258, %v457
    %v459 = vpop.f32.mrf.mxu0
    %v460 = vpop.f32.mrf.mxu0
    %461 = vdwg.mxu0
    %v462 = vmax.f32 %v456, 0.0
    %v463 = vmax.f32 %v458, 0.0
    %v464 = vpack.c.bf16 %v462, %v462
    %v465 = vpack.c.bf16 %v463, %v463
    %v466 = vld [vmem:[#allocation5] sm:$0xff]
    %v467 = vld [vmem:[#allocation5 + $0x8] sm:$0xff]
    %v468 = vld [vmem:[#allocation5 + $0x10] sm:$0xff]
    %v469 = vld [vmem:[#allocation5 + $0x18] sm:$0xff]
    %v470 = vld [vmem:[#allocation5 + $0x20] sm:$0xff]
    %v471 = vld [vmem:[#allocation5 + $0x28] sm:$0xff]
    %v472 = vld [vmem:[#allocation5 + $0x30] sm:$0xff]
    %v473 = vld [vmem:[#allocation5 + $0x38] sm:$0xff]
    %v474 = vld [vmem:[#allocation5 + $0x40] sm:$0xff]
    %v475 = vld [vmem:[#allocation5 + $0x48] sm:$0xff]
    %v476 = vld [vmem:[#allocation5 + $0x50] sm:$0xff]
    %v477 = vld [vmem:[#allocation5 + $0x58] sm:$0xff]
    %v478 = vld [vmem:[#allocation5 + $0x60] sm:$0xff]
    %v479 = vld [vmem:[#allocation5 + $0x68] sm:$0xff]
    %v480 = vld [vmem:[#allocation5 + $0x70] sm:$0xff]
    %v481 = vld [vmem:[#allocation5 + $0x78] sm:$0xff]
    %v482 = vld [vmem:[#allocation5 + $0x80] sm:$0xff]
    %v483 = vld [vmem:[#allocation5 + $0x88] sm:$0xff]
    %v484 = vld [vmem:[#allocation5 + $0x90] sm:$0xff]
    %v485 = vld [vmem:[#allocation5 + $0x98] sm:$0xff]
    %v486 = vld [vmem:[#allocation5 + $0xa0] sm:$0xff]
    %v487 = vld [vmem:[#allocation5 + $0xa8] sm:$0xff]
    %v488 = vld [vmem:[#allocation5 + $0xb0] sm:$0xff]
    %v489 = vld [vmem:[#allocation5 + $0xb8] sm:$0xff]
    %v490 = vld [vmem:[#allocation5 + $0xc0] sm:$0xff]
    %v491 = vld [vmem:[#allocation5 + $0xc8] sm:$0xff]
    %v492 = vld [vmem:[#allocation5 + $0xd0] sm:$0xff]
    %v493 = vld [vmem:[#allocation5 + $0xd8] sm:$0xff]
    %v494 = vld [vmem:[#allocation5 + $0xe0] sm:$0xff]
    %v495 = vld [vmem:[#allocation5 + $0xe8] sm:$0xff]
    %v496 = vld [vmem:[#allocation5 + $0xf0] sm:$0xff]
    %v497 = vld [vmem:[#allocation5 + $0xf8] sm:$0xff]
    %v498 = vld [vmem:[%s6] sm:$0x3]
    %v500 = vlaneseq
    %v501 = vshrl.u32 %v500, 7
    %v502 = vsub.s32 0, %v501
    %v503 = vrot.slane %v498, %v502
    %v504 = vlaneseq
    %v505 = vshrl.u32 %v504, 7
    %v506 = vsub.s32 1, %v505
    %v507 = vrot.slane %v498, %v506
    %v542 = vunpack.c.l.b16 %v466
    %v543 = vunpack.c.h.b16 %v466
    %v544 = vunpack.c.l.b16 %v467
    %v545 = vunpack.c.h.b16 %v467
    %v546 = vunpack.c.l.b16 %v468
    %v547 = vunpack.c.h.b16 %v468
    %v548 = vunpack.c.l.b16 %v469
    %v549 = vunpack.c.h.b16 %v469
    %v550 = vunpack.c.l.b16 %v470
    %v551 = vunpack.c.h.b16 %v470
    %v552 = vunpack.c.l.b16 %v471
    %v553 = vunpack.c.h.b16 %v471
    %v554 = vunpack.c.l.b16 %v472
    %v555 = vunpack.c.h.b16 %v472
    %v556 = vunpack.c.l.b16 %v473
    %v557 = vunpack.c.h.b16 %v473
    %v558 = vunpack.c.l.b16 %v474
    %v559 = vunpack.c.h.b16 %v474
    %v560 = vunpack.c.l.b16 %v475
    %v561 = vunpack.c.h.b16 %v475
    %v562 = vunpack.c.l.b16 %v476
    %v563 = vunpack.c.h.b16 %v476
    %v564 = vunpack.c.l.b16 %v477
    %v565 = vunpack.c.h.b16 %v477
    %v566 = vunpack.c.l.b16 %v478
    %v567 = vunpack.c.h.b16 %v478
    %v568 = vunpack.c.l.b16 %v479
    %v569 = vunpack.c.h.b16 %v479
    %v570 = vunpack.c.l.b16 %v480
    %v571 = vunpack.c.h.b16 %v480
    %v572 = vunpack.c.l.b16 %v481
    %v573 = vunpack.c.h.b16 %v481
    %v574 = vunpack.c.l.b16 %v482
    %v575 = vunpack.c.h.b16 %v482
    %v576 = vunpack.c.l.b16 %v483
    %v577 = vunpack.c.h.b16 %v483
    %v578 = vunpack.c.l.b16 %v484
    %v579 = vunpack.c.h.b16 %v484
    %v580 = vunpack.c.l.b16 %v485
    %v581 = vunpack.c.h.b16 %v485
    %v582 = vunpack.c.l.b16 %v486
    %v583 = vunpack.c.h.b16 %v486
    %v584 = vunpack.c.l.b16 %v487
    %v585 = vunpack.c.h.b16 %v487
    %v586 = vunpack.c.l.b16 %v488
    %v587 = vunpack.c.h.b16 %v488
    %v588 = vunpack.c.l.b16 %v489
    %v589 = vunpack.c.h.b16 %v489
    %v590 = vunpack.c.l.b16 %v490
    %v591 = vunpack.c.h.b16 %v490
    %v592 = vunpack.c.l.b16 %v491
    %v593 = vunpack.c.h.b16 %v491
    %v594 = vunpack.c.l.b16 %v492
    %v595 = vunpack.c.h.b16 %v492
    %v596 = vunpack.c.l.b16 %v493
    %v597 = vunpack.c.h.b16 %v493
    %v598 = vunpack.c.l.b16 %v494
    %v599 = vunpack.c.h.b16 %v494
    %v600 = vunpack.c.l.b16 %v495
    %v601 = vunpack.c.h.b16 %v495
    %v602 = vunpack.c.l.b16 %v496
    %v603 = vunpack.c.h.b16 %v496
    %v604 = vunpack.c.l.b16 %v497
    %v605 = vunpack.c.h.b16 %v497
    %v606 = vpack.c.b16 %v544, %v542
    %v607 = vpack.c.b16 %v545, %v543
    %v608 = vpack.c.b16 %v548, %v546
    %v609 = vpack.c.b16 %v549, %v547
    %v610 = vpack.c.b16 %v552, %v550
    %v611 = vpack.c.b16 %v553, %v551
    %v612 = vpack.c.b16 %v556, %v554
    %v613 = vpack.c.b16 %v557, %v555
    %v614 = vpack.c.b16 %v560, %v558
    %v615 = vpack.c.b16 %v561, %v559
    %v616 = vpack.c.b16 %v564, %v562
    %v617 = vpack.c.b16 %v565, %v563
    %v618 = vpack.c.b16 %v568, %v566
    %v619 = vpack.c.b16 %v569, %v567
    %v620 = vpack.c.b16 %v572, %v570
    %v621 = vpack.c.b16 %v573, %v571
    %v622 = vpack.c.b16 %v576, %v574
    %v623 = vpack.c.b16 %v577, %v575
    %v624 = vpack.c.b16 %v580, %v578
    %v625 = vpack.c.b16 %v581, %v579
    %v626 = vpack.c.b16 %v584, %v582
    %v627 = vpack.c.b16 %v585, %v583
    %v628 = vpack.c.b16 %v588, %v586
    %v629 = vpack.c.b16 %v589, %v587
    %v630 = vpack.c.b16 %v592, %v590
    %v631 = vpack.c.b16 %v593, %v591
    %v632 = vpack.c.b16 %v596, %v594
    %v633 = vpack.c.b16 %v597, %v595
    %v634 = vpack.c.b16 %v600, %v598
    %v635 = vpack.c.b16 %v601, %v599
    %v636 = vpack.c.b16 %v604, %v602
    %v637 = vpack.c.b16 %v605, %v603
    %670 = vmatprep.subr.bf16.mxu0 %v621
    %671 = vmatpush1.bf16.msra.mxu0 %v620
    %672 = vmatprep.subr.bf16.mxu0 %v619
    %673 = vmatpush1.bf16.msra.mxu0 %v618
    %674 = vmatprep.subr.bf16.mxu0 %v617
    %675 = vmatpush1.bf16.msra.mxu0 %v616
    %676 = vmatprep.subr.bf16.mxu0 %v615
    %677 = vmatpush1.bf16.msra.mxu0 %v614
    %678 = vmatprep.subr.bf16.mxu0 %v613
    %679 = vmatpush1.bf16.msra.mxu0 %v612
    %680 = vmatprep.subr.bf16.mxu0 %v611
    %681 = vmatpush1.bf16.msra.mxu0 %v610
    %682 = vmatprep.subr.bf16.mxu0 %v609
    %683 = vmatpush1.bf16.msra.mxu0 %v608
    %684 = vmatprep.subr.bf16.mxu0 %v607
    %685 = vmatpush1.bf16.msra.mxu0 %v606
    %686 = vmatprep.subr.bf16.mxu0 %v637
    %687 = vmatpush2.bf16.msra.mxu0 %v636
    %688 = vmatprep.subr.bf16.mxu0 %v635
    %689 = vmatpush2.bf16.msra.mxu0 %v634
    %690 = vmatprep.subr.bf16.mxu0 %v633
    %691 = vmatpush2.bf16.msra.mxu0 %v632
    %692 = vmatprep.subr.bf16.mxu0 %v631
    %693 = vmatpush2.bf16.msra.mxu0 %v630
    %694 = vmatprep.subr.bf16.mxu0 %v629
    %695 = vmatpush2.bf16.msra.mxu0 %v628
    %696 = vmatprep.subr.bf16.mxu0 %v627
    %697 = vmatpush2.bf16.msra.mxu0 %v626
    %698 = vmatprep.subr.bf16.mxu0 %v625
    %699 = vmatpush2.bf16.msra.mxu0 %v624
    %700 = vmatprep.subr.bf16.mxu0 %v623
    %701 = vmatpush2.bf16.msra.mxu0 %v622
    %702 = vmatprep.mubr.bf16.mxu0 %v465
    %703 = vmatmul.mubr.bf16.gmra.mxu0 %v464
    %v704 = vpop.f32.mrf.mxu0
    %v705 = vadd.f32 %v503, %v704
    %v706 = vpop.f32.mrf.mxu0
    %v707 = vadd.f32 %v507, %v706
    %v708 = vpop.f32.mrf.mxu0
    %v709 = vpop.f32.mrf.mxu0
    %710 = vdwg.mxu0
    %v711 = vmax.f32 %v705, 0.0
    %v712 = vmax.f32 %v707, 0.0
    %v713 = vpack.c.bf16 %v711, %v711
    %v714 = vpack.c.bf16 %v712, %v712
    %v715 = vld [vmem:[%s7] sm:$0xf]
    %v716 = vld [vmem:[%s7 + $0x4] sm:$0xf]
    %v717 = vld [vmem:[%s7 + $0x8] sm:$0xf]
    %v718 = vld [vmem:[%s7 + $0xc] sm:$0xf]
    %v719 = vld [vmem:[%s7 + $0x10] sm:$0xf]
    %v720 = vld [vmem:[%s7 + $0x14] sm:$0xf]
    %v721 = vld [vmem:[%s7 + $0x18] sm:$0xf]
    %v722 = vld [vmem:[%s7 + $0x1c] sm:$0xf]
    %v723 = vld [vmem:[%s7 + $0x20] sm:$0xf]
    %v724 = vld [vmem:[%s7 + $0x24] sm:$0xf]
    %v725 = vld [vmem:[%s7 + $0x28] sm:$0xf]
    %v726 = vld [vmem:[%s7 + $0x2c] sm:$0xf]
    %v727 = vld [vmem:[%s7 + $0x30] sm:$0xf]
    %v728 = vld [vmem:[%s7 + $0x34] sm:$0xf]
    %v729 = vld [vmem:[%s7 + $0x38] sm:$0xf]
    %v730 = vld [vmem:[%s7 + $0x3c] sm:$0xf]
    %v731 = vld [vmem:[%s7 + $0x40] sm:$0xf]
    %v732 = vld [vmem:[%s7 + $0x44] sm:$0xf]
    %v733 = vld [vmem:[%s7 + $0x48] sm:$0xf]
    %v734 = vld [vmem:[%s7 + $0x4c] sm:$0xf]
    %v735 = vld [vmem:[%s7 + $0x50] sm:$0xf]
    %v736 = vld [vmem:[%s7 + $0x54] sm:$0xf]
    %v737 = vld [vmem:[%s7 + $0x58] sm:$0xf]
    %v738 = vld [vmem:[%s7 + $0x5c] sm:$0xf]
    %v739 = vld [vmem:[%s7 + $0x60] sm:$0xf]
    %v740 = vld [vmem:[%s7 + $0x64] sm:$0xf]
    %v741 = vld [vmem:[%s7 + $0x68] sm:$0xf]
    %v742 = vld [vmem:[%s7 + $0x6c] sm:$0xf]
    %v743 = vld [vmem:[%s7 + $0x70] sm:$0xf]
    %v744 = vld [vmem:[%s7 + $0x74] sm:$0xf]
    %v745 = vld [vmem:[%s7 + $0x78] sm:$0xf]
    %v746 = vld [vmem:[%s7 + $0x7c] sm:$0xf]
    %v747 = vld [vmem:[%s8] sm:$0x1]
    %v749 = vlaneseq
    %v750 = vshrl.u32 %v749, 7
    %v751 = vsub.s32 0, %v750
    %v752 = vrot.slane %v747, %v751
    %v786 = vunpack.c.l.b16 %v715
    %v787 = vunpack.c.l.b16 %v716
    %v788 = vunpack.c.l.b16 %v717
    %v789 = vunpack.c.l.b16 %v718
    %v790 = vunpack.c.l.b16 %v719
    %v791 = vunpack.c.l.b16 %v720
    %v792 = vunpack.c.l.b16 %v721
    %v793 = vunpack.c.l.b16 %v722
    %v794 = vunpack.c.l.b16 %v723
    %v795 = vunpack.c.l.b16 %v724
    %v796 = vunpack.c.l.b16 %v725
    %v797 = vunpack.c.l.b16 %v726
    %v798 = vunpack.c.l.b16 %v727
    %v799 = vunpack.c.l.b16 %v728
    %v800 = vunpack.c.l.b16 %v729
    %v801 = vunpack.c.l.b16 %v730
    %v802 = vunpack.c.l.b16 %v731
    %v803 = vunpack.c.l.b16 %v732
    %v804 = vunpack.c.l.b16 %v733
    %v805 = vunpack.c.l.b16 %v734
    %v806 = vunpack.c.l.b16 %v735
    %v807 = vunpack.c.l.b16 %v736
    %v808 = vunpack.c.l.b16 %v737
    %v809 = vunpack.c.l.b16 %v738
    %v810 = vunpack.c.l.b16 %v739
    %v811 = vunpack.c.l.b16 %v740
    %v812 = vunpack.c.l.b16 %v741
    %v813 = vunpack.c.l.b16 %v742
    %v814 = vunpack.c.l.b16 %v743
    %v815 = vunpack.c.l.b16 %v744
    %v816 = vunpack.c.l.b16 %v745
    %v817 = vunpack.c.l.b16 %v746
    %v818 = vpack.c.b16 %v787, %v786
    %v819 = vpack.c.b16 %v789, %v788
    %v820 = vpack.c.b16 %v791, %v790
    %v821 = vpack.c.b16 %v793, %v792
    %v822 = vpack.c.b16 %v795, %v794
    %v823 = vpack.c.b16 %v797, %v796
    %v824 = vpack.c.b16 %v799, %v798
    %v825 = vpack.c.b16 %v801, %v800
    %v826 = vpack.c.b16 %v803, %v802
    %v827 = vpack.c.b16 %v805, %v804
    %v828 = vpack.c.b16 %v807, %v806
    %v829 = vpack.c.b16 %v809, %v808
    %v830 = vpack.c.b16 %v811, %v810
    %v831 = vpack.c.b16 %v813, %v812
    %v832 = vpack.c.b16 %v815, %v814
    %v833 = vpack.c.b16 %v817, %v816
    %850 = vmatprep.subr.bf16.mxu0 0
    %851 = vmatpush1.bf16.msra.mxu0 %v825
    %852 = vmatprep.subr.bf16.mxu0 0
    %853 = vmatpush1.bf16.msra.mxu0 %v824
    %854 = vmatprep.subr.bf16.mxu0 0
    %855 = vmatpush1.bf16.msra.mxu0 %v823
    %856 = vmatprep.subr.bf16.mxu0 0
    %857 = vmatpush1.bf16.msra.mxu0 %v822
    %858 = vmatprep.subr.bf16.mxu0 0
    %859 = vmatpush1.bf16.msra.mxu0 %v821
    %860 = vmatprep.subr.bf16.mxu0 0
    %861 = vmatpush1.bf16.msra.mxu0 %v820
    %862 = vmatprep.subr.bf16.mxu0 0
    %863 = vmatpush1.bf16.msra.mxu0 %v819
    %864 = vmatprep.subr.bf16.mxu0 0
    %865 = vmatpush1.bf16.msra.mxu0 %v818
    %866 = vmatprep.subr.bf16.mxu0 0
    %867 = vmatpush2.bf16.msra.mxu0 %v833
    %868 = vmatprep.subr.bf16.mxu0 0
    %869 = vmatpush2.bf16.msra.mxu0 %v832
    %870 = vmatprep.subr.bf16.mxu0 0
    %871 = vmatpush2.bf16.msra.mxu0 %v831
    %872 = vmatprep.subr.bf16.mxu0 0
    %873 = vmatpush2.bf16.msra.mxu0 %v830
    %874 = vmatprep.subr.bf16.mxu0 0
    %875 = vmatpush2.bf16.msra.mxu0 %v829
    %876 = vmatprep.subr.bf16.mxu0 0
    %877 = vmatpush2.bf16.msra.mxu0 %v828
    %878 = vmatprep.subr.bf16.mxu0 0
    %879 = vmatpush2.bf16.msra.mxu0 %v827
    %880 = vmatprep.subr.bf16.mxu0 0
    %881 = vmatpush2.bf16.msra.mxu0 %v826
    %882 = vmatprep.mubr.bf16.mxu0 %v714
    %883 = vmatmul.mubr.bf16.gmra.mxu0 %v713
    %v884 = vpop.f32.mrf.mxu0
    %v885 = vadd.f32 %v752, %v884
    %v886 = vpop.f32.mrf.mxu0
    %v887 = vpop.f32.mrf.mxu0
    %v888 = vpop.f32.mrf.mxu0
    %889 = vdwg.mxu0
    %v890 = vsub.f32 0.0, %v885
    %v891 = vmul.f32 %v890, 1.442695
    %v892 = vpow.pop %v891
    %v893 = vadd.f32 %v892, 1.0
    %v894 = vrcp.pop %v893
    %v895 = vmul.f32 1.0, %v894
    %vm896 = vcmask 261120
    %897 = vst.msk [vmem:[#allocation7] sm:$0xff] %vm896, %v895
    // Predicated region
    $region46: #{tpu_custom_call.1} parent=1 // pred_check
      _
    $region47: #{tpu_custom_call.1} parent=1 // pred_check_branch
      %899 = sbr.rel (0) target = $region49
    $region48: #{tpu_custom_call.1} parent=1 // pred_region
      %s901 = ssub.s32 128, 128
      %902 = vsyncadd [#allocation4], %s901
      %s904 = sshll.u32 [#allocation7], 4
      %s905 = int_to_ptr.vmem [resolvable:$true] %s904
      %907 = dma.vmem_to_hbm [thread:$0]  %s905, 128, %s9, [#allocation4]
    $region49: #{tpu_custom_call.1} parent=1 // pred_fallthru
      _
    // Predicated region
    $region50: #{tpu_custom_call.1} parent=1 // pred_check
      _
    $region51: #{tpu_custom_call.1} parent=1 // pred_check_branch
      %909 = sbr.rel (0) target = $region53
    $region52: #{tpu_custom_call.1} parent=1 // pred_region
      %910 = dma.done [#allocation4], 128
    $region53: #{tpu_custom_call.1} parent=1 // pred_fallthru
      _
    %911 = vsyncpa [#allocation3], 1
    %912 = vsyncpa [#allocation6], 1
    %913 = vsyncpa [#allocation4], 1

</llo_original>
